<compile_context>
chip_gen: v7x
topology: tpu7x:2x2x1
jax: 0.10.0
libtpu: 0.0.40
codegen_flags: <defaults>
</compile_context>

<pallas_src>
import jax
import jax.numpy as jnp
from jax.experimental import pallas as pl
from jax.experimental.pallas import tpu as pltpu

HIDDEN = 256
LANE = 128


def _cdiv(a: int, b: int) -> int:
    return -(-a // b)


def _round_up(n: int, m: int) -> int:
    return _cdiv(n, m) * m


def _pick_tile_m(batch: int, block_m: int) -> int:
    """Batch-tile rows: multiple of 16, never exceeding batch.

    * batch <= 128: one full-batch tile (block dim == array dim is always a
      legal block shape, and megacore sharding is not worth it at this size).
    * batch  > 128: fewest grid steps subject to >= 2 (v7x megacore) and a
      per-tile cap of block_m; tile rounded to 16 rows (bf16 sublane packing),
      which also minimizes clipped-tile waste for that step count.
    """
    batch = max(int(batch), 1)
    block_m = max(16, (int(block_m) // 16) * 16)
    if batch <= 128:
        return batch
    steps = max(2, _cdiv(batch, block_m))
    tm = _round_up(_cdiv(batch, steps), 16)
    return min(tm, (batch // 16) * 16)   # guarantee tm <= batch


def _actor_kernel(scale_ref, x_ref, w1_ref, b1_ref, w2_ref, b2_ref,
                  w3_ref, b3_ref, o_ref):
    """One batch tile of the fused 3-layer MLP (weights fully VMEM-resident)."""
    scale = scale_ref[0, 0]               # max_action, runtime scalar in SMEM
    mm_dtype = w1_ref.dtype                # bf16 MXU inputs

    # layer 1: Linear(state_pad -> 256) + ReLU   (MXU matmul, f32 accumulate)
    h = jnp.dot(x_ref[...], w1_ref[...], preferred_element_type=jnp.float32)
    h = jnp.maximum(h + b1_ref[...], 0.0)

    # layer 2: Linear(256 -> 256) + ReLU
    h = jnp.dot(h.astype(mm_dtype), w2_ref[...],
                preferred_element_type=jnp.float32)
    h = jnp.maximum(h + b2_ref[...], 0.0)

    # layer 3: Linear(256 -> action_pad) + Tanh, scaled by max_action
    h = jnp.dot(h.astype(mm_dtype), w3_ref[...],
                preferred_element_type=jnp.float32)
    o_ref[...] = (jnp.tanh(h + b3_ref[...]) * scale).astype(o_ref.dtype)


def prepare_actor_params(params, *, param_dtype=jnp.bfloat16):
    """One-time prep: pad skinny dims to 128 lanes and cast weights to bf16.

    params: w1 (S,256), b1 (1,256), w2 (256,256), b2 (1,256), w3 (256,A),
            b3 (1,A).  Weights are stored (in, out), i.e. transposed relative
            to PyTorch nn.Linear, so the kernel computes x @ W + b.
    Call this once (outside the hot path) and reuse the result.
    """
    w1 = jnp.asarray(params["w1"])
    w2 = jnp.asarray(params["w2"])
    w3 = jnp.asarray(params["w3"])
    state_dim, hidden = w1.shape
    action_dim = w3.shape[1]
    s_pad = _round_up(state_dim, LANE)
    a_pad = _round_up(action_dim, LANE)

    w1_p = jnp.zeros((s_pad, hidden), param_dtype)
    w1_p = w1_p.at[:state_dim, :].set(w1.astype(param_dtype))
    w2_p = w2.astype(param_dtype)
    w3_p = jnp.zeros((hidden, a_pad), param_dtype)
    w3_p = w3_p.at[:, :action_dim].set(w3.astype(param_dtype))

    b1 = jnp.asarray(params["b1"], jnp.float32).reshape(1, hidden)
    b2 = jnp.asarray(params["b2"], jnp.float32).reshape(1, hidden)
    b3 = jnp.asarray(params["b3"], jnp.float32).reshape(1, action_dim)
    b3_p = jnp.zeros((1, a_pad), jnp.float32).at[:, :action_dim].set(b3)

    return dict(w1=w1_p, b1=b1, w2=w2_p, b2=b2, w3=w3_p, b3=b3_p)


def actor_forward(x, prepared, max_action, action_dim, *, block_m=512,
                  out_dtype=jnp.float32):
    """Fused Actor forward: tanh(relu(relu(x@W1+b1)@W2+b2)@W3+b3) * max_action.

    x:          (batch, state_dim) float32
    prepared:   output of prepare_actor_params (pre-padded bf16 weights)
    max_action: runtime scalar (SMEM; no recompile per value)
    action_dim: static int (true output width; kernel N is lane-padded to 128)
    """
    batch, state_dim = x.shape
    s_pad, hidden = prepared["w1"].shape
    a_pad = prepared["w3"].shape[1]
    assert state_dim <= s_pad and action_dim <= a_pad
    mm_dtype = prepared["w1"].dtype

    # Only per-call preprocessing: lane-pad + cast x (tiny: batch x 128 bf16).
    if state_dim == s_pad:
        x_p = x.astype(mm_dtype)
    else:
        x_p = jnp.zeros((batch, s_pad), mm_dtype)
        x_p = x_p.at[:, :state_dim].set(x.astype(mm_dtype))

    tm = _pick_tile_m(batch, block_m)
    grid = (_cdiv(batch, tm),)
    scale = jnp.asarray(max_action, jnp.float32).reshape(1, 1)
    resident = lambda shape: pl.BlockSpec(shape, lambda i: (0, 0))

    cost = pl.CostEstimate(
        flops=2 * batch * (s_pad * hidden + hidden * hidden + hidden * a_pad),
        transcendentals=batch * a_pad,
        bytes_accessed=(batch * s_pad * 2 + batch * a_pad * 2
                        + sum(int(v.size) * v.dtype.itemsize
                              for v in prepared.values())))

    out = pl.pallas_call(
        _actor_kernel,
        out_shape=jax.ShapeDtypeStruct((batch, a_pad), jnp.bfloat16),
        grid=grid,
        in_specs=[
            # max_action scalar in SMEM
            pl.BlockSpec((1, 1), lambda i: (0, 0),
                         memory_space=pltpu.MemorySpace.SMEM),
            # x: streamed per batch tile (last tile clipped if batch % tm != 0)
            pl.BlockSpec((tm, s_pad), lambda i: (i, 0)),
            # weights / biases: VMEM-resident across the whole grid
            resident((s_pad, hidden)),
            resident((1, hidden)),
            resident((hidden, hidden)),
            resident((1, hidden)),
            resident((hidden, a_pad)),
            resident((1, a_pad)),
        ],
        out_specs=pl.BlockSpec((tm, a_pad), lambda i: (i, 0)),
        compiler_params=pltpu.CompilerParams(
            dimension_semantics=("parallel",)),
        cost_estimate=cost,
    )(scale, x_p, prepared["w1"], prepared["b1"], prepared["w2"],
      prepared["b2"], prepared["w3"], prepared["b3"])

    return out[:, :action_dim].astype(out_dtype)


def init_actor_params(key, state_dim, action_dim):
    """Deterministic init mimicking nn.Linear default (uniform +/- 1/sqrt(fan_in))."""
    ks = jax.random.split(key, 6)

    def linear(kw, kb, fan_in, fan_out):
        bound = 1.0 / jnp.sqrt(fan_in)
        w = jax.random.uniform(kw, (fan_in, fan_out), jnp.float32, -bound, bound)
        b = jax.random.uniform(kb, (1, fan_out), jnp.float32, -bound, bound)
        return w, b

    w1, b1 = linear(ks[0], ks[1], state_dim, HIDDEN)
    w2, b2 = linear(ks[2], ks[3], HIDDEN, HIDDEN)
    w3, b3 = linear(ks[4], ks[5], HIDDEN, action_dim)
    return dict(w1=w1, b1=b1, w2=w2, b2=b2, w3=w3, b3=b3)


def actor_reference(x, params, max_action, dot_dtype=jnp.float32):
    """Pure-JAX reference. dot_dtype=bf16 mirrors the kernel's MXU precision."""
    def mm(a, w):
        return jnp.dot(a.astype(dot_dtype), w.astype(dot_dtype),
                       preferred_element_type=jnp.float32)

    h1 = jnp.maximum(mm(x, params["w1"]) + params["b1"], 0.0)
    h2 = jnp.maximum(mm(h1, params["w2"]) + params["b2"], 0.0)
    return jnp.tanh(mm(h2, params["w3"]) + params["b3"]) * max_action


if __name__ == "__main__":
    key = jax.random.PRNGKey(0)
    k_params, k_x1, k_x2 = jax.random.split(key, 3)

    state_dim, action_dim = 17, 6
    max_action = 2.0

    params = init_actor_params(k_params, state_dim, action_dim)
    prepared = prepare_actor_params(params)        # one-time, outside hot path

    fwd = jax.jit(actor_forward, static_argnums=(3,))

    # --- small batch: single full-batch tile ---
    batch = 8
    x = jax.random.normal(k_x1, (batch, state_dim), jnp.float32)
    out = jax.block_until_ready(fwd(x, prepared, max_action, action_dim))
    assert out.shape == (batch, action_dim) and out.dtype == jnp.float32

    ref_bf16 = actor_reference(x, params, max_action, dot_dtype=jnp.bfloat16)
    assert jnp.allclose(out, ref_bf16, atol=2e-2, rtol=2e-2), "mismatch vs bf16 ref"
    ref_f32 = actor_reference(x, params, max_action)
    assert jnp.allclose(out, ref_f32, atol=6e-2, rtol=6e-2), "mismatch vs f32 ref"

    # --- larger batch: multi-step parallel grid with a clipped last tile ---
    batch2 = 200
    x2 = jax.random.normal(k_x2, (batch2, state_dim), jnp.float32)
    out2 = jax.block_until_ready(fwd(x2, prepared, max_action, action_dim))
    assert out2.shape == (batch2, action_dim)
    ref2 = actor_reference(x2, params, max_action, dot_dtype=jnp.bfloat16)
    assert jnp.allclose(out2, ref2, atol=2e-2, rtol=2e-2), "mismatch (batch=200)"

    print("KERNEL_OK")
</pallas_src>

<mosaic_0001>
module attributes {stable_mosaic.version = 11 : i64} {
  func.func @_actor_kernel(%arg0: i32, %arg1: memref<1x1xf32, #tpu.memory_space<smem>>, %arg2: memref<8x128xbf16, #tpu.memory_space<vmem>>, %arg3: memref<128x256xbf16, #tpu.memory_space<vmem>>, %arg4: memref<1x256xf32, #tpu.memory_space<vmem>>, %arg5: memref<256x256xbf16, #tpu.memory_space<vmem>>, %arg6: memref<1x256xf32, #tpu.memory_space<vmem>>, %arg7: memref<256x128xbf16, #tpu.memory_space<vmem>>, %arg8: memref<1x128xf32, #tpu.memory_space<vmem>>, %arg9: memref<8x128xbf16, #tpu.memory_space<vmem>>) attributes {dimension_semantics = [#tpu.dimension_semantics<parallel>], iteration_bounds = array<i64: 1>, scalar_prefetch = 0 : i64, scratch_operands = 0 : i64, tpu.core_type = #tpu.core_type<tc>, window_params = [{transform_indices = @transform_0, window_bounds = array<i64: 1, 1>}, {transform_indices = @transform_1, window_bounds = array<i64: 8, 128>}, {pipeline_mode = #tpu.pipeline_mode<synchronous>, transform_indices = @transform_2, window_bounds = array<i64: 128, 256>}, {pipeline_mode = #tpu.pipeline_mode<synchronous>, transform_indices = @transform_3, window_bounds = array<i64: 1, 256>}, {pipeline_mode = #tpu.pipeline_mode<synchronous>, transform_indices = @transform_4, window_bounds = array<i64: 256, 256>}, {pipeline_mode = #tpu.pipeline_mode<synchronous>, transform_indices = @transform_5, window_bounds = array<i64: 1, 256>}, {pipeline_mode = #tpu.pipeline_mode<synchronous>, transform_indices = @transform_6, window_bounds = array<i64: 256, 128>}, {pipeline_mode = #tpu.pipeline_mode<synchronous>, transform_indices = @transform_7, window_bounds = array<i64: 1, 128>}, {transform_indices = @transform_8, window_bounds = array<i64: 8, 128>}]} {
    %c0 = arith.constant 0 : index
    %c0_0 = arith.constant 0 : index
    %0 = memref.load %arg1[%c0, %c0_0] : memref<1x1xf32, #tpu.memory_space<smem>>
    %c0_1 = arith.constant 0 : index
    %c0_2 = arith.constant 0 : index
    %1 = vector.load %arg2[%c0_1, %c0_2] : memref<8x128xbf16, #tpu.memory_space<vmem>>, vector<8x128xbf16>
    %c0_3 = arith.constant 0 : index
    %c0_4 = arith.constant 0 : index
    %2 = vector.load %arg3[%c0_3, %c0_4] : memref<128x256xbf16, #tpu.memory_space<vmem>>, vector<128x256xbf16>
    %cst = arith.constant dense<0.000000e+00> : vector<8x256xf32>
    %3 = tpu.matmul %1, %2, %cst {dimension_numbers = #tpu.dot_dimension_numbers<[1], [0], [0], [1], [0, 0, 1, 1], [], []>} : vector<8x128xbf16>, vector<128x256xbf16>, vector<8x256xf32> -> vector<8x256xf32>
    %c0_5 = arith.constant 0 : index
    %c0_6 = arith.constant 0 : index
    %4 = vector.load %arg4[%c0_5, %c0_6] : memref<1x256xf32, #tpu.memory_space<vmem>>, vector<1x256xf32>
    %5 = vector.broadcast %4 : vector<1x256xf32> to vector<8x256xf32>
    %6 = arith.addf %3, %5 : vector<8x256xf32>
    %cst_7 = arith.constant 0.000000e+00 : f32
    %7 = vector.broadcast %cst_7 : f32 to vector<8x256xf32>
    %8 = arith.maximumf %6, %7 : vector<8x256xf32>
    %9 = arith.truncf %8 : vector<8x256xf32> to vector<8x256xbf16>
    %c0_8 = arith.constant 0 : index
    %c0_9 = arith.constant 0 : index
    %10 = vector.load %arg5[%c0_8, %c0_9] : memref<256x256xbf16, #tpu.memory_space<vmem>>, vector<256x256xbf16>
    %cst_10 = arith.constant dense<0.000000e+00> : vector<8x256xf32>
    %11 = tpu.matmul %9, %10, %cst_10 {dimension_numbers = #tpu.dot_dimension_numbers<[1], [0], [0], [1], [0, 0, 1, 1], [], []>} : vector<8x256xbf16>, vector<256x256xbf16>, vector<8x256xf32> -> vector<8x256xf32>
    %c0_11 = arith.constant 0 : index
    %c0_12 = arith.constant 0 : index
    %12 = vector.load %arg6[%c0_11, %c0_12] : memref<1x256xf32, #tpu.memory_space<vmem>>, vector<1x256xf32>
    %13 = vector.broadcast %12 : vector<1x256xf32> to vector<8x256xf32>
    %14 = arith.addf %11, %13 : vector<8x256xf32>
    %cst_13 = arith.constant 0.000000e+00 : f32
    %15 = vector.broadcast %cst_13 : f32 to vector<8x256xf32>
    %16 = arith.maximumf %14, %15 : vector<8x256xf32>
    %17 = arith.truncf %16 : vector<8x256xf32> to vector<8x256xbf16>
    %c0_14 = arith.constant 0 : index
    %c0_15 = arith.constant 0 : index
    %18 = vector.load %arg7[%c0_14, %c0_15] : memref<256x128xbf16, #tpu.memory_space<vmem>>, vector<256x128xbf16>
    %cst_16 = arith.constant dense<0.000000e+00> : vector<8x128xf32>
    %19 = tpu.matmul %17, %18, %cst_16 {dimension_numbers = #tpu.dot_dimension_numbers<[1], [0], [0], [1], [0, 0, 1, 1], [], []>} : vector<8x256xbf16>, vector<256x128xbf16>, vector<8x128xf32> -> vector<8x128xf32>
    %c0_17 = arith.constant 0 : index
    %c0_18 = arith.constant 0 : index
    %20 = vector.load %arg8[%c0_17, %c0_18] : memref<1x128xf32, #tpu.memory_space<vmem>>, vector<1x128xf32>
    %21 = vector.broadcast %20 : vector<1x128xf32> to vector<8x128xf32>
    %22 = arith.addf %19, %21 : vector<8x128xf32>
    %23 = math.tanh %22 : vector<8x128xf32>
    %24 = vector.broadcast %0 : f32 to vector<8x128xf32>
    %25 = arith.mulf %23, %24 : vector<8x128xf32>
    %26 = arith.truncf %25 : vector<8x128xf32> to vector<8x128xbf16>
    %c0_19 = arith.constant 0 : index
    %c0_20 = arith.constant 0 : index
    %27 = vector.load %arg9[%c0_19, %c0_20] : memref<8x128xbf16, #tpu.memory_space<vmem>>, vector<8x128xbf16>
    tpu.vector_store %arg9[%c0_19, %c0_20], %26 {strides = array<i32>} : memref<8x128xbf16, #tpu.memory_space<vmem>>, vector<8x128xbf16>,
    return
  }
  func.func @transform_0(%arg0: i32) -> (i32, i32) {
    %c0_i32 = arith.constant 0 : i32
    %c0_i32_0 = arith.constant 0 : i32
    %c0_i32_1 = arith.constant 0 : i32
    return %c0_i32, %c0_i32_0 : i32, i32
  }
  func.func @transform_1(%arg0: i32) -> (i32, i32) {
    %c0_i32 = arith.constant 0 : i32
    %c0_i32_0 = arith.constant 0 : i32
    return %arg0, %c0_i32 : i32, i32
  }
  func.func @transform_2(%arg0: i32) -> (i32, i32) {
    %c0_i32 = arith.constant 0 : i32
    %c0_i32_0 = arith.constant 0 : i32
    %c0_i32_1 = arith.constant 0 : i32
    return %c0_i32, %c0_i32_0 : i32, i32
  }
  func.func @transform_3(%arg0: i32) -> (i32, i32) {
    %c0_i32 = arith.constant 0 : i32
    %c0_i32_0 = arith.constant 0 : i32
    %c0_i32_1 = arith.constant 0 : i32
    return %c0_i32, %c0_i32_0 : i32, i32
  }
  func.func @transform_4(%arg0: i32) -> (i32, i32) {
    %c0_i32 = arith.constant 0 : i32
    %c0_i32_0 = arith.constant 0 : i32
    %c0_i32_1 = arith.constant 0 : i32
    return %c0_i32, %c0_i32_0 : i32, i32
  }
  func.func @transform_5(%arg0: i32) -> (i32, i32) {
    %c0_i32 = arith.constant 0 : i32
    %c0_i32_0 = arith.constant 0 : i32
    %c0_i32_1 = arith.constant 0 : i32
    return %c0_i32, %c0_i32_0 : i32, i32
  }
  func.func @transform_6(%arg0: i32) -> (i32, i32) {
    %c0_i32 = arith.constant 0 : i32
    %c0_i32_0 = arith.constant 0 : i32
    %c0_i32_1 = arith.constant 0 : i32
    return %c0_i32, %c0_i32_0 : i32, i32
  }
  func.func @transform_7(%arg0: i32) -> (i32, i32) {
    %c0_i32 = arith.constant 0 : i32
    %c0_i32_0 = arith.constant 0 : i32
    %c0_i32_1 = arith.constant 0 : i32
    return %c0_i32, %c0_i32_0 : i32, i32
  }
  func.func @transform_8(%arg0: i32) -> (i32, i32) {
    %c0_i32 = arith.constant 0 : i32
    %c0_i32_0 = arith.constant 0 : i32
    return %arg0, %c0_i32 : i32, i32
  }
}

</mosaic_0001>

<llo_original>
// kernel: actor_forward.1
$region0: #{actor_forward.1}
  #allocation0 [shape = 'u32[]', space=smem, size = 0x4, offset = 0x4, fixed_abs, tag = 'smem constant byte address 0x4 - core index']
  #allocation1 [shape = 'u32[144,128]{1,0:T(1,128)}', space=vmem, size = 0x12000, scoped, tag = 'internal scratch']
  #allocation2 [shape = 'f32[1,1]{1,0:T(1,128)S(6)}', space=smem, size = 0x200, scoped, tag = 'scoped memory for actor_forward.1']
  %s0 = inlined_call_operand.<no memory space> [shape: f32[1,1], index: 0, kind: input, shape index: {}]
  %s1 = inlined_call_operand.vmem [shape: bf16[8,128], index: 1, kind: input, shape index: {}]
  %s2 = inlined_call_operand.hbm [shape: bf16[128,256], index: 2, kind: input, shape index: {}]
  %s3 = inlined_call_operand.vmem [shape: f32[1,256], index: 3, kind: input, shape index: {}]
  %s4 = inlined_call_operand.hbm [shape: bf16[256,256], index: 4, kind: input, shape index: {}]
  %s5 = inlined_call_operand.vmem [shape: f32[1,256], index: 5, kind: input, shape index: {}]
  %s6 = inlined_call_operand.hbm [shape: bf16[256,128], index: 6, kind: input, shape index: {}]
  %s7 = inlined_call_operand.vmem [shape: f32[1,128], index: 7, kind: input, shape index: {}]
  %s8 = inlined_call_operand.vmem [shape: bf16[8,128], index: 8, kind: output, shape index: {}]
  %s9 = sld [smem:[#allocation0]]
  $region54: #{actor_forward.1} parent=0
    _
  %s11 = ssub.s32 1, %s9
  %s12 = scalar_select 0, %s11, %s9
  %13 = sst [smem:[#allocation2]] %s0
  $region1: #{actor_forward.1} parent=0
    #allocation3 [shape = 'u8[65536]{0}', space=vmem, size = 0x10000, scoped, tag = 'input window, operand 2, single buffered']
    #allocation4 [shape = 's32[1]{0}', space=sflag, size = 0x4, scoped, tag = 'scoped memory for actor_forward.1']
    #allocation5 [shape = 'u8[131072]{0}', space=vmem, size = 0x20000, scoped, tag = 'input window, operand 4, single buffered']
    #allocation6 [shape = 's32[1]{0}', space=sflag, size = 0x4, scoped, tag = 'scoped memory for actor_forward.1']
    #allocation7 [shape = 'u8[65536]{0}', space=vmem, size = 0x10000, scoped, tag = 'input window, operand 6, single buffered']
    %14 = vsyncpa [#allocation4], 0
    %15 = vsyncpa [#allocation6], 0
    // Predicated region
    $region2: #{actor_forward.1} parent=1 // pred_check
      _
    $region3: #{actor_forward.1} parent=1 // pred_check_branch
      %17 = sbr.rel (0) target = $region5
    $region4: #{actor_forward.1} parent=1 // pred_region
      _
    $region5: #{actor_forward.1} parent=1 // pred_fallthru
      _
    // Predicated region
    $region6: #{actor_forward.1} parent=1 // pred_check
      _
    $region7: #{actor_forward.1} parent=1 // pred_check_branch
      %19 = sbr.rel (0) target = $region9
    $region8: #{actor_forward.1} parent=1 // pred_region
      _
    $region9: #{actor_forward.1} parent=1 // pred_fallthru
      _
    // Predicated region
    $region10: #{actor_forward.1} parent=1 // pred_check
      _
    $region11: #{actor_forward.1} parent=1 // pred_check_branch
      %21 = sbr.rel (0) target = $region13
    $region12: #{actor_forward.1} parent=1 // pred_region
      %s23 = ssub.s32 2048, 2048
      %24 = vsyncadd [#allocation4], %s23
      %s25 = sshll.u32 [#allocation3], 4
      %s26 = int_to_ptr.vmem [resolvable:$true] %s25
      %31 = dma.hbm_to_vmem [thread:$0]  %s2, 2048, %s26, [#allocation4], 128, 128, 8
    $region13: #{actor_forward.1} parent=1 // pred_fallthru
      _
    // Predicated region
    $region14: #{actor_forward.1} parent=1 // pred_check
      _
    $region15: #{actor_forward.1} parent=1 // pred_check_branch
      %33 = sbr.rel (0) target = $region17
    $region16: #{actor_forward.1} parent=1 // pred_region
      _
    $region17: #{actor_forward.1} parent=1 // pred_fallthru
      _
    // Predicated region
    $region18: #{actor_forward.1} parent=1 // pred_check
      _
    $region19: #{actor_forward.1} parent=1 // pred_check_branch
      %35 = sbr.rel (0) target = $region21
    $region20: #{actor_forward.1} parent=1 // pred_region
      %s37 = ssub.s32 4096, 4096
      %38 = vsyncadd [#allocation6], %s37
      %s39 = sshll.u32 [#allocation5], 4
      %s40 = int_to_ptr.vmem [resolvable:$true] %s39
      %45 = dma.hbm_to_vmem [thread:$0]  %s4, 4096, %s40, [#allocation6], 128, 128, 8
    $region21: #{actor_forward.1} parent=1 // pred_fallthru
      _
    // Predicated region
    $region22: #{actor_forward.1} parent=1 // pred_check
      _
    $region23: #{actor_forward.1} parent=1 // pred_check_branch
      %47 = sbr.rel (0) target = $region25
    $region24: #{actor_forward.1} parent=1 // pred_region
      _
    $region25: #{actor_forward.1} parent=1 // pred_fallthru
      _
    // Predicated region
    $region26: #{actor_forward.1} parent=1 // pred_check
      _
    $region27: #{actor_forward.1} parent=1 // pred_check_branch
      %49 = sbr.rel (0) target = $region29
    $region28: #{actor_forward.1} parent=1 // pred_region
      %s51 = ssub.s32 2048, 2048
      %52 = vsyncadd [#allocation6], %s51
      %s53 = sshll.u32 [#allocation7], 4
      %s54 = int_to_ptr.vmem [resolvable:$true] %s53
      %59 = dma.hbm_to_vmem [thread:$0]  %s6, 2048, %s54, [#allocation6], 64, 64, 4
    $region29: #{actor_forward.1} parent=1 // pred_fallthru
      _
    // Predicated region
    $region30: #{actor_forward.1} parent=1 // pred_check
      _
    $region31: #{actor_forward.1} parent=1 // pred_check_branch
      %61 = sbr.rel (0) target = $region33
    $region32: #{actor_forward.1} parent=1 // pred_region
      _
    $region33: #{actor_forward.1} parent=1 // pred_fallthru
      _
    // Predicated region
    $region34: #{actor_forward.1} parent=1 // pred_check
      _
    $region35: #{actor_forward.1} parent=1 // pred_check_branch
      %63 = sbr.rel (0) target = $region37
    $region36: #{actor_forward.1} parent=1 // pred_region
      %64 = dma.done [#allocation4], 2048
    $region37: #{actor_forward.1} parent=1 // pred_fallthru
      _
    // Predicated region
    $region38: #{actor_forward.1} parent=1 // pred_check
      _
    $region39: #{actor_forward.1} parent=1 // pred_check_branch
      %66 = sbr.rel (0) target = $region41
    $region40: #{actor_forward.1} parent=1 // pred_region
      %67 = dma.done [#allocation6], 4096
    $region41: #{actor_forward.1} parent=1 // pred_fallthru
      _
    // Predicated region
    $region42: #{actor_forward.1} parent=1 // pred_check
      _
    $region43: #{actor_forward.1} parent=1 // pred_check_branch
      %69 = sbr.rel (0) target = $region45
    $region44: #{actor_forward.1} parent=1 // pred_region
      %70 = dma.done [#allocation6], 2048
    $region45: #{actor_forward.1} parent=1 // pred_fallthru
      _
    %s72 = sld [smem:[#allocation2]]
    %v73 = vld [vmem:[%s1] sm:$0xf]
    %v74 = vld [vmem:[#allocation3] sm:$0xff]
    %v75 = vld [vmem:[#allocation3 + $0x8] sm:$0xff]
    %v76 = vld [vmem:[#allocation3 + $0x10] sm:$0xff]
    %v77 = vld [vmem:[#allocation3 + $0x18] sm:$0xff]
    %v78 = vld [vmem:[#allocation3 + $0x20] sm:$0xff]
    %v79 = vld [vmem:[#allocation3 + $0x28] sm:$0xff]
    %v80 = vld [vmem:[#allocation3 + $0x30] sm:$0xff]
    %v81 = vld [vmem:[#allocation3 + $0x38] sm:$0xff]
    %v82 = vld [vmem:[#allocation3 + $0x40] sm:$0xff]
    %v83 = vld [vmem:[#allocation3 + $0x48] sm:$0xff]
    %v84 = vld [vmem:[#allocation3 + $0x50] sm:$0xff]
    %v85 = vld [vmem:[#allocation3 + $0x58] sm:$0xff]
    %v86 = vld [vmem:[#allocation3 + $0x60] sm:$0xff]
    %v87 = vld [vmem:[#allocation3 + $0x68] sm:$0xff]
    %v88 = vld [vmem:[#allocation3 + $0x70] sm:$0xff]
    %v89 = vld [vmem:[#allocation3 + $0x78] sm:$0xff]
    %v90 = vld [vmem:[%s3] sm:$0x3]
    %v92 = vlaneseq
    %v93 = vshrl.u32 %v92, 7
    %v94 = vsub.s32 0, %v93
    %v95 = vrot.slane %v90, %v94
    %v96 = vlaneseq
    %v97 = vshrl.u32 %v96, 7
    %v98 = vsub.s32 1, %v97
    %v99 = vrot.slane %v90, %v98
    %v118 = vunpack.c.l.b16 %v74
    %v119 = vunpack.c.h.b16 %v74
    %v120 = vunpack.c.l.b16 %v75
    %v121 = vunpack.c.h.b16 %v75
    %v122 = vunpack.c.l.b16 %v76
    %v123 = vunpack.c.h.b16 %v76
    %v124 = vunpack.c.l.b16 %v77
    %v125 = vunpack.c.h.b16 %v77
    %v126 = vunpack.c.l.b16 %v78
    %v127 = vunpack.c.h.b16 %v78
    %v128 = vunpack.c.l.b16 %v79
    %v129 = vunpack.c.h.b16 %v79
    %v130 = vunpack.c.l.b16 %v80
    %v131 = vunpack.c.h.b16 %v80
    %v132 = vunpack.c.l.b16 %v81
    %v133 = vunpack.c.h.b16 %v81
    %v134 = vunpack.c.l.b16 %v82
    %v135 = vunpack.c.h.b16 %v82
    %v136 = vunpack.c.l.b16 %v83
    %v137 = vunpack.c.h.b16 %v83
    %v138 = vunpack.c.l.b16 %v84
    %v139 = vunpack.c.h.b16 %v84
    %v140 = vunpack.c.l.b16 %v85
    %v141 = vunpack.c.h.b16 %v85
    %v142 = vunpack.c.l.b16 %v86
    %v143 = vunpack.c.h.b16 %v86
    %v144 = vunpack.c.l.b16 %v87
    %v145 = vunpack.c.h.b16 %v87
    %v146 = vunpack.c.l.b16 %v88
    %v147 = vunpack.c.h.b16 %v88
    %v148 = vunpack.c.l.b16 %v89
    %v149 = vunpack.c.h.b16 %v89
    %v150 = vpack.c.b16 %v120, %v118
    %v151 = vpack.c.b16 %v121, %v119
    %v152 = vpack.c.b16 %v124, %v122
    %v153 = vpack.c.b16 %v125, %v123
    %v154 = vpack.c.b16 %v128, %v126
    %v155 = vpack.c.b16 %v129, %v127
    %v156 = vpack.c.b16 %v132, %v130
    %v157 = vpack.c.b16 %v133, %v131
    %v158 = vpack.c.b16 %v136, %v134
    %v159 = vpack.c.b16 %v137, %v135
    %v160 = vpack.c.b16 %v140, %v138
    %v161 = vpack.c.b16 %v141, %v139
    %v162 = vpack.c.b16 %v144, %v142
    %v163 = vpack.c.b16 %v145, %v143
    %v164 = vpack.c.b16 %v148, %v146
    %v165 = vpack.c.b16 %v149, %v147
    %182 = vmatprep.subr.bf16.mxu0 %v151
    %183 = vmatpush1.bf16.msra.mxu0 %v150
    %184 = vmatprep.subr.bf16.mxu0 %v153
    %185 = vmatpush1.bf16.msra.mxu0 %v152
    %186 = vmatprep.subr.bf16.mxu0 %v155
    %187 = vmatpush1.bf16.msra.mxu0 %v154
    %188 = vmatprep.subr.bf16.mxu0 %v157
    %189 = vmatpush1.bf16.msra.mxu0 %v156
    %190 = vmatprep.subr.bf16.mxu0 %v159
    %191 = vmatpush1.bf16.msra.mxu0 %v158
    %192 = vmatprep.subr.bf16.mxu0 %v161
    %193 = vmatpush1.bf16.msra.mxu0 %v160
    %194 = vmatprep.subr.bf16.mxu0 %v163
    %195 = vmatpush1.bf16.msra.mxu0 %v162
    %196 = vmatprep.subr.bf16.mxu0 %v165
    %197 = vmatpush1.bf16.msra.mxu0 %v164
    %198 = vmatprep.subr.bf16.mxu0 0
    %199 = vmatpush1.bf16.msra.mxu0 0
    %200 = vmatprep.subr.bf16.mxu0 0
    %201 = vmatpush1.bf16.msra.mxu0 0
    %202 = vmatprep.subr.bf16.mxu0 0
    %203 = vmatpush1.bf16.msra.mxu0 0
    %204 = vmatprep.subr.bf16.mxu0 0
    %205 = vmatpush1.bf16.msra.mxu0 0
    %206 = vmatprep.subr.bf16.mxu0 0
    %207 = vmatpush1.bf16.msra.mxu0 0
    %208 = vmatprep.subr.bf16.mxu0 0
    %209 = vmatpush1.bf16.msra.mxu0 0
    %210 = vmatprep.subr.bf16.mxu0 0
    %211 = vmatpush1.bf16.msra.mxu0 0
    %212 = vmatprep.subr.bf16.mxu0 0
    %213 = vmatpush1.bf16.msra.mxu0 0
    %214 = vmatprep.mubr.bf16.mxu0 0
    %215 = vmatmul.mubr.bf16.gmra.mrb[0].mxu0 %v73
    %v216 = vpop.f32.mrb[0].mxu0
    %v217 = vadd.f32 %v95, %v216
    %v218 = vpop.f32.mrb[0].mxu0
    %v219 = vadd.f32 %v99, %v218
    %v220 = vpop.f32.mrb[0].mxu0
    %v221 = vpop.f32.mrb[0].mxu0
    %222 = vdwg.mxu0
    %v223 = vmax.f32 %v217, 0.0
    %v224 = vmax.f32 %v219, 0.0
    %v225 = vpack.c.bf16 %v223, %v223
    %v226 = vpack.c.bf16 %v224, %v224
    %v227 = vld [vmem:[#allocation5] sm:$0xff]
    %v228 = vld [vmem:[#allocation5 + $0x8] sm:$0xff]
    %v229 = vld [vmem:[#allocation5 + $0x10] sm:$0xff]
    %v230 = vld [vmem:[#allocation5 + $0x18] sm:$0xff]
    %v231 = vld [vmem:[#allocation5 + $0x20] sm:$0xff]
    %v232 = vld [vmem:[#allocation5 + $0x28] sm:$0xff]
    %v233 = vld [vmem:[#allocation5 + $0x30] sm:$0xff]
    %v234 = vld [vmem:[#allocation5 + $0x38] sm:$0xff]
    %v235 = vld [vmem:[#allocation5 + $0x40] sm:$0xff]
    %v236 = vld [vmem:[#allocation5 + $0x48] sm:$0xff]
    %v237 = vld [vmem:[#allocation5 + $0x50] sm:$0xff]
    %v238 = vld [vmem:[#allocation5 + $0x58] sm:$0xff]
    %v239 = vld [vmem:[#allocation5 + $0x60] sm:$0xff]
    %v240 = vld [vmem:[#allocation5 + $0x68] sm:$0xff]
    %v241 = vld [vmem:[#allocation5 + $0x70] sm:$0xff]
    %v242 = vld [vmem:[#allocation5 + $0x78] sm:$0xff]
    %v243 = vld [vmem:[#allocation5 + $0x80] sm:$0xff]
    %v244 = vld [vmem:[#allocation5 + $0x88] sm:$0xff]
    %v245 = vld [vmem:[#allocation5 + $0x90] sm:$0xff]
    %v246 = vld [vmem:[#allocation5 + $0x98] sm:$0xff]
    %v247 = vld [vmem:[#allocation5 + $0xa0] sm:$0xff]
    %v248 = vld [vmem:[#allocation5 + $0xa8] sm:$0xff]
    %v249 = vld [vmem:[#allocation5 + $0xb0] sm:$0xff]
    %v250 = vld [vmem:[#allocation5 + $0xb8] sm:$0xff]
    %v251 = vld [vmem:[#allocation5 + $0xc0] sm:$0xff]
    %v252 = vld [vmem:[#allocation5 + $0xc8] sm:$0xff]
    %v253 = vld [vmem:[#allocation5 + $0xd0] sm:$0xff]
    %v254 = vld [vmem:[#allocation5 + $0xd8] sm:$0xff]
    %v255 = vld [vmem:[#allocation5 + $0xe0] sm:$0xff]
    %v256 = vld [vmem:[#allocation5 + $0xe8] sm:$0xff]
    %v257 = vld [vmem:[#allocation5 + $0xf0] sm:$0xff]
    %v258 = vld [vmem:[#allocation5 + $0xf8] sm:$0xff]
    %v259 = vld [vmem:[%s5] sm:$0x3]
    %v261 = vlaneseq
    %v262 = vshrl.u32 %v261, 7
    %v263 = vsub.s32 0, %v262
    %v264 = vrot.slane %v259, %v263
    %v265 = vlaneseq
    %v266 = vshrl.u32 %v265, 7
    %v267 = vsub.s32 1, %v266
    %v268 = vrot.slane %v259, %v267
    %v303 = vunpack.c.l.b16 %v227
    %v304 = vunpack.c.h.b16 %v227
    %v305 = vunpack.c.l.b16 %v228
    %v306 = vunpack.c.h.b16 %v228
    %v307 = vunpack.c.l.b16 %v229
    %v308 = vunpack.c.h.b16 %v229
    %v309 = vunpack.c.l.b16 %v230
    %v310 = vunpack.c.h.b16 %v230
    %v311 = vunpack.c.l.b16 %v231
    %v312 = vunpack.c.h.b16 %v231
    %v313 = vunpack.c.l.b16 %v232
    %v314 = vunpack.c.h.b16 %v232
    %v315 = vunpack.c.l.b16 %v233
    %v316 = vunpack.c.h.b16 %v233
    %v317 = vunpack.c.l.b16 %v234
    %v318 = vunpack.c.h.b16 %v234
    %v319 = vunpack.c.l.b16 %v235
    %v320 = vunpack.c.h.b16 %v235
    %v321 = vunpack.c.l.b16 %v236
    %v322 = vunpack.c.h.b16 %v236
    %v323 = vunpack.c.l.b16 %v237
    %v324 = vunpack.c.h.b16 %v237
    %v325 = vunpack.c.l.b16 %v238
    %v326 = vunpack.c.h.b16 %v238
    %v327 = vunpack.c.l.b16 %v239
    %v328 = vunpack.c.h.b16 %v239
    %v329 = vunpack.c.l.b16 %v240
    %v330 = vunpack.c.h.b16 %v240
    %v331 = vunpack.c.l.b16 %v241
    %v332 = vunpack.c.h.b16 %v241
    %v333 = vunpack.c.l.b16 %v242
    %v334 = vunpack.c.h.b16 %v242
    %v335 = vunpack.c.l.b16 %v243
    %v336 = vunpack.c.h.b16 %v243
    %v337 = vunpack.c.l.b16 %v244
    %v338 = vunpack.c.h.b16 %v244
    %v339 = vunpack.c.l.b16 %v245
    %v340 = vunpack.c.h.b16 %v245
    %v341 = vunpack.c.l.b16 %v246
    %v342 = vunpack.c.h.b16 %v246
    %v343 = vunpack.c.l.b16 %v247
    %v344 = vunpack.c.h.b16 %v247
    %v345 = vunpack.c.l.b16 %v248
    %v346 = vunpack.c.h.b16 %v248
    %v347 = vunpack.c.l.b16 %v249
    %v348 = vunpack.c.h.b16 %v249
    %v349 = vunpack.c.l.b16 %v250
    %v350 = vunpack.c.h.b16 %v250
    %v351 = vunpack.c.l.b16 %v251
    %v352 = vunpack.c.h.b16 %v251
    %v353 = vunpack.c.l.b16 %v252
    %v354 = vunpack.c.h.b16 %v252
    %v355 = vunpack.c.l.b16 %v253
    %v356 = vunpack.c.h.b16 %v253
    %v357 = vunpack.c.l.b16 %v254
    %v358 = vunpack.c.h.b16 %v254
    %v359 = vunpack.c.l.b16 %v255
    %v360 = vunpack.c.h.b16 %v255
    %v361 = vunpack.c.l.b16 %v256
    %v362 = vunpack.c.h.b16 %v256
    %v363 = vunpack.c.l.b16 %v257
    %v364 = vunpack.c.h.b16 %v257
    %v365 = vunpack.c.l.b16 %v258
    %v366 = vunpack.c.h.b16 %v258
    %v367 = vpack.c.b16 %v305, %v303
    %v368 = vpack.c.b16 %v306, %v304
    %v369 = vpack.c.b16 %v309, %v307
    %v370 = vpack.c.b16 %v310, %v308
    %v371 = vpack.c.b16 %v313, %v311
    %v372 = vpack.c.b16 %v314, %v312
    %v373 = vpack.c.b16 %v317, %v315
    %v374 = vpack.c.b16 %v318, %v316
    %v375 = vpack.c.b16 %v321, %v319
    %v376 = vpack.c.b16 %v322, %v320
    %v377 = vpack.c.b16 %v325, %v323
    %v378 = vpack.c.b16 %v326, %v324
    %v379 = vpack.c.b16 %v329, %v327
    %v380 = vpack.c.b16 %v330, %v328
    %v381 = vpack.c.b16 %v333, %v331
    %v382 = vpack.c.b16 %v334, %v332
    %v383 = vpack.c.b16 %v337, %v335
    %v384 = vpack.c.b16 %v338, %v336
    %v385 = vpack.c.b16 %v341, %v339
    %v386 = vpack.c.b16 %v342, %v340
    %v387 = vpack.c.b16 %v345, %v343
    %v388 = vpack.c.b16 %v346, %v344
    %v389 = vpack.c.b16 %v349, %v347
    %v390 = vpack.c.b16 %v350, %v348
    %v391 = vpack.c.b16 %v353, %v351
    %v392 = vpack.c.b16 %v354, %v352
    %v393 = vpack.c.b16 %v357, %v355
    %v394 = vpack.c.b16 %v358, %v356
    %v395 = vpack.c.b16 %v361, %v359
    %v396 = vpack.c.b16 %v362, %v360
    %v397 = vpack.c.b16 %v365, %v363
    %v398 = vpack.c.b16 %v366, %v364
    %431 = vmatprep.subr.bf16.mxu0 %v368
    %432 = vmatpush1.bf16.msra.mxu0 %v367
    %433 = vmatprep.subr.bf16.mxu0 %v370
    %434 = vmatpush1.bf16.msra.mxu0 %v369
    %435 = vmatprep.subr.bf16.mxu0 %v372
    %436 = vmatpush1.bf16.msra.mxu0 %v371
    %437 = vmatprep.subr.bf16.mxu0 %v374
    %438 = vmatpush1.bf16.msra.mxu0 %v373
    %439 = vmatprep.subr.bf16.mxu0 %v376
    %440 = vmatpush1.bf16.msra.mxu0 %v375
    %441 = vmatprep.subr.bf16.mxu0 %v378
    %442 = vmatpush1.bf16.msra.mxu0 %v377
    %443 = vmatprep.subr.bf16.mxu0 %v380
    %444 = vmatpush1.bf16.msra.mxu0 %v379
    %445 = vmatprep.subr.bf16.mxu0 %v382
    %446 = vmatpush1.bf16.msra.mxu0 %v381
    %447 = vmatprep.subr.bf16.mxu0 %v384
    %448 = vmatpush1.bf16.msra.mxu0 %v383
    %449 = vmatprep.subr.bf16.mxu0 %v386
    %450 = vmatpush1.bf16.msra.mxu0 %v385
    %451 = vmatprep.subr.bf16.mxu0 %v388
    %452 = vmatpush1.bf16.msra.mxu0 %v387
    %453 = vmatprep.subr.bf16.mxu0 %v390
    %454 = vmatpush1.bf16.msra.mxu0 %v389
    %455 = vmatprep.subr.bf16.mxu0 %v392
    %456 = vmatpush1.bf16.msra.mxu0 %v391
    %457 = vmatprep.subr.bf16.mxu0 %v394
    %458 = vmatpush1.bf16.msra.mxu0 %v393
    %459 = vmatprep.subr.bf16.mxu0 %v396
    %460 = vmatpush1.bf16.msra.mxu0 %v395
    %461 = vmatprep.subr.bf16.mxu0 %v398
    %462 = vmatpush1.bf16.msra.mxu0 %v397
    %463 = vmatprep.mubr.bf16.mxu0 %v226
    %464 = vmatmul.mubr.bf16.gmra.mrb[0].mxu0 %v225
    %v465 = vpop.f32.mrb[0].mxu0
    %v466 = vadd.f32 %v264, %v465
    %v467 = vpop.f32.mrb[0].mxu0
    %v468 = vadd.f32 %v268, %v467
    %v469 = vpop.f32.mrb[0].mxu0
    %v470 = vpop.f32.mrb[0].mxu0
    %471 = vdwg.mxu0
    %v472 = vmax.f32 %v466, 0.0
    %v473 = vmax.f32 %v468, 0.0
    %v474 = vpack.c.bf16 %v472, %v472
    %v475 = vpack.c.bf16 %v473, %v473
    %v476 = vld [vmem:[#allocation7] sm:$0xf]
    %v477 = vld [vmem:[#allocation7 + $0x4] sm:$0xf]
    %v478 = vld [vmem:[#allocation7 + $0x8] sm:$0xf]
    %v479 = vld [vmem:[#allocation7 + $0xc] sm:$0xf]
    %v480 = vld [vmem:[#allocation7 + $0x10] sm:$0xf]
    %v481 = vld [vmem:[#allocation7 + $0x14] sm:$0xf]
    %v482 = vld [vmem:[#allocation7 + $0x18] sm:$0xf]
    %v483 = vld [vmem:[#allocation7 + $0x1c] sm:$0xf]
    %v484 = vld [vmem:[#allocation7 + $0x20] sm:$0xf]
    %v485 = vld [vmem:[#allocation7 + $0x24] sm:$0xf]
    %v486 = vld [vmem:[#allocation7 + $0x28] sm:$0xf]
    %v487 = vld [vmem:[#allocation7 + $0x2c] sm:$0xf]
    %v488 = vld [vmem:[#allocation7 + $0x30] sm:$0xf]
    %v489 = vld [vmem:[#allocation7 + $0x34] sm:$0xf]
    %v490 = vld [vmem:[#allocation7 + $0x38] sm:$0xf]
    %v491 = vld [vmem:[#allocation7 + $0x3c] sm:$0xf]
    %v492 = vld [vmem:[#allocation7 + $0x40] sm:$0xf]
    %v493 = vld [vmem:[#allocation7 + $0x44] sm:$0xf]
    %v494 = vld [vmem:[#allocation7 + $0x48] sm:$0xf]
    %v495 = vld [vmem:[#allocation7 + $0x4c] sm:$0xf]
    %v496 = vld [vmem:[#allocation7 + $0x50] sm:$0xf]
    %v497 = vld [vmem:[#allocation7 + $0x54] sm:$0xf]
    %v498 = vld [vmem:[#allocation7 + $0x58] sm:$0xf]
    %v499 = vld [vmem:[#allocation7 + $0x5c] sm:$0xf]
    %v500 = vld [vmem:[#allocation7 + $0x60] sm:$0xf]
    %v501 = vld [vmem:[#allocation7 + $0x64] sm:$0xf]
    %v502 = vld [vmem:[#allocation7 + $0x68] sm:$0xf]
    %v503 = vld [vmem:[#allocation7 + $0x6c] sm:$0xf]
    %v504 = vld [vmem:[#allocation7 + $0x70] sm:$0xf]
    %v505 = vld [vmem:[#allocation7 + $0x74] sm:$0xf]
    %v506 = vld [vmem:[#allocation7 + $0x78] sm:$0xf]
    %v507 = vld [vmem:[#allocation7 + $0x7c] sm:$0xf]
    %v508 = vld [vmem:[%s7] sm:$0x1]
    %v510 = vlaneseq
    %v511 = vshrl.u32 %v510, 7
    %v512 = vsub.s32 0, %v511
    %v513 = vrot.slane %v508, %v512
    %v547 = vunpack.c.l.b16 %v476
    %v548 = vunpack.c.l.b16 %v477
    %v549 = vunpack.c.l.b16 %v478
    %v550 = vunpack.c.l.b16 %v479
    %v551 = vunpack.c.l.b16 %v480
    %v552 = vunpack.c.l.b16 %v481
    %v553 = vunpack.c.l.b16 %v482
    %v554 = vunpack.c.l.b16 %v483
    %v555 = vunpack.c.l.b16 %v484
    %v556 = vunpack.c.l.b16 %v485
    %v557 = vunpack.c.l.b16 %v486
    %v558 = vunpack.c.l.b16 %v487
    %v559 = vunpack.c.l.b16 %v488
    %v560 = vunpack.c.l.b16 %v489
    %v561 = vunpack.c.l.b16 %v490
    %v562 = vunpack.c.l.b16 %v491
    %v563 = vunpack.c.l.b16 %v492
    %v564 = vunpack.c.l.b16 %v493
    %v565 = vunpack.c.l.b16 %v494
    %v566 = vunpack.c.l.b16 %v495
    %v567 = vunpack.c.l.b16 %v496
    %v568 = vunpack.c.l.b16 %v497
    %v569 = vunpack.c.l.b16 %v498
    %v570 = vunpack.c.l.b16 %v499
    %v571 = vunpack.c.l.b16 %v500
    %v572 = vunpack.c.l.b16 %v501
    %v573 = vunpack.c.l.b16 %v502
    %v574 = vunpack.c.l.b16 %v503
    %v575 = vunpack.c.l.b16 %v504
    %v576 = vunpack.c.l.b16 %v505
    %v577 = vunpack.c.l.b16 %v506
    %v578 = vunpack.c.l.b16 %v507
    %v579 = vpack.c.b16 %v548, %v547
    %v580 = vpack.c.b16 %v550, %v549
    %v581 = vpack.c.b16 %v552, %v551
    %v582 = vpack.c.b16 %v554, %v553
    %v583 = vpack.c.b16 %v556, %v555
    %v584 = vpack.c.b16 %v558, %v557
    %v585 = vpack.c.b16 %v560, %v559
    %v586 = vpack.c.b16 %v562, %v561
    %v587 = vpack.c.b16 %v564, %v563
    %v588 = vpack.c.b16 %v566, %v565
    %v589 = vpack.c.b16 %v568, %v567
    %v590 = vpack.c.b16 %v570, %v569
    %v591 = vpack.c.b16 %v572, %v571
    %v592 = vpack.c.b16 %v574, %v573
    %v593 = vpack.c.b16 %v576, %v575
    %v594 = vpack.c.b16 %v578, %v577
    %611 = vmatprep.subr.bf16.mxu0 0
    %612 = vmatpush1.bf16.msra.mxu0 %v579
    %613 = vmatprep.subr.bf16.mxu0 0
    %614 = vmatpush1.bf16.msra.mxu0 %v580
    %615 = vmatprep.subr.bf16.mxu0 0
    %616 = vmatpush1.bf16.msra.mxu0 %v581
    %617 = vmatprep.subr.bf16.mxu0 0
    %618 = vmatpush1.bf16.msra.mxu0 %v582
    %619 = vmatprep.subr.bf16.mxu0 0
    %620 = vmatpush1.bf16.msra.mxu0 %v583
    %621 = vmatprep.subr.bf16.mxu0 0
    %622 = vmatpush1.bf16.msra.mxu0 %v584
    %623 = vmatprep.subr.bf16.mxu0 0
    %624 = vmatpush1.bf16.msra.mxu0 %v585
    %625 = vmatprep.subr.bf16.mxu0 0
    %626 = vmatpush1.bf16.msra.mxu0 %v586
    %627 = vmatprep.subr.bf16.mxu0 0
    %628 = vmatpush1.bf16.msra.mxu0 %v587
    %629 = vmatprep.subr.bf16.mxu0 0
    %630 = vmatpush1.bf16.msra.mxu0 %v588
    %631 = vmatprep.subr.bf16.mxu0 0
    %632 = vmatpush1.bf16.msra.mxu0 %v589
    %633 = vmatprep.subr.bf16.mxu0 0
    %634 = vmatpush1.bf16.msra.mxu0 %v590
    %635 = vmatprep.subr.bf16.mxu0 0
    %636 = vmatpush1.bf16.msra.mxu0 %v591
    %637 = vmatprep.subr.bf16.mxu0 0
    %638 = vmatpush1.bf16.msra.mxu0 %v592
    %639 = vmatprep.subr.bf16.mxu0 0
    %640 = vmatpush1.bf16.msra.mxu0 %v593
    %641 = vmatprep.subr.bf16.mxu0 0
    %642 = vmatpush1.bf16.msra.mxu0 %v594
    %643 = vmatprep.mubr.bf16.mxu0 %v475
    %644 = vmatmul.mubr.bf16.gmra.mrb[0].mxu0 %v474
    %v645 = vpop.f32.mrb[0].mxu0
    %v646 = vadd.f32 %v513, %v645
    %v647 = vpop.f32.mrb[0].mxu0
    %v648 = vpop.f32.mrb[0].mxu0
    %v649 = vpop.f32.mrb[0].mxu0
    %650 = vdwg.mxu0
    %v651 = vtanh.pop %v646
    %v652 = vstv %s72
    %v653 = vmul.f32 %v651, %v652
    %v654 = vpack.c.bf16 %v653, %v653
    %655 = vst [vmem:[%s8] sm:$0xf] %v654
    // Predicated region
    $region46: #{actor_forward.1} parent=1 // pred_check
      _
    $region47: #{actor_forward.1} parent=1 // pred_check_branch
      %657 = sbr.rel (0) target = $region49
    $region48: #{actor_forward.1} parent=1 // pred_region
      _
    $region49: #{actor_forward.1} parent=1 // pred_fallthru
      _
    // Predicated region
    $region50: #{actor_forward.1} parent=1 // pred_check
      _
    $region51: #{actor_forward.1} parent=1 // pred_check_branch
      %659 = sbr.rel (0) target = $region53
    $region52: #{actor_forward.1} parent=1 // pred_region
      _
    $region53: #{actor_forward.1} parent=1 // pred_fallthru
      _
    %660 = vsyncpa [#allocation4], 1
    %661 = vsyncpa [#allocation6], 1

</llo_original>
